<compile_context>
chip_gen: v7x
topology: tpu7x:2x2x1
jax: 0.10.0
libtpu: 0.0.40
codegen_flags: <defaults>
</compile_context>

<pallas_src>
import functools

import jax
import jax.numpy as jnp
from jax.experimental import pallas as pl
from jax.experimental.pallas import tpu as pltpu


def _round_up(x, m):
    return (x + m - 1) // m * m


def _vmem_limit_bytes():
    """Per-generation scoped-VMEM limit (v7x: 32 of 64 MiB; v5e/v6e: 48 of 128 MiB)."""
    try:
        cap = pltpu.get_tpu_info().vmem_capacity_bytes
    except Exception:
        cap = 64 * 1024 * 1024  # conservative fallback: v7x per-core physical VMEM
    return int(min(cap // 2, 48 * 1024 * 1024))


def _ls_ce_kernel(x_ref, t_ref, out_ref, *, smoothing, n_valid, block_rows):
    """One grid step: (TM, C) logits + (TM, 1) targets -> (1, 8, 128) partial loss sum.

    Per row (fused): loss = lse - sum_c w_c * shifted_c  with
      w_c = smoothing/C + (1 - smoothing) * [c == target],
    which folds the target log-prob and the -mean(logprobs) smoothing term into a
    single weighted lane reduce. Rows whose global index >= n_valid (padding or
    ragged-tail garbage, possibly inf/NaN) are masked before the tile reduction.
    """
    confidence = 1.0 - smoothing
    C = x_ref.shape[-1]
    uniform = smoothing / C

    x = x_ref[...].astype(jnp.float32)                         # (TM, C) compute in f32
    t = t_ref[...]                                             # (TM, 1) int32

    m = jnp.max(x, axis=-1, keepdims=True)                     # (TM, 1)
    shifted = x - m                                            # (TM, C); x dead after this

    # stable log-sum-exp denominator (exp/log issue on the EUP slot)
    lse = jnp.log(jnp.sum(jnp.exp(shifted), axis=-1, keepdims=True))   # (TM, 1)

    # fused weighted reduce: uniform smoothing weight + one-hot confidence weight
    col = jax.lax.broadcasted_iota(jnp.int32, shifted.shape, 1)        # (TM, C)
    w = jnp.where(col == t, confidence + uniform, uniform)             # (TM, C)
    wsum = jnp.sum(w * shifted, axis=-1, keepdims=True)                # (TM, 1)

    per_row = lse - wsum                                               # (TM, 1)

    # mask padded / ragged-tail rows by global row index, then reduce the tile
    row = (pl.program_id(0) * block_rows
           + jax.lax.broadcasted_iota(jnp.int32, (block_rows, 1), 0))  # (TM, 1)
    per_row = jnp.where(row < n_valid, per_row, 0.0)

    partial = jnp.sum(per_row, axis=0, keepdims=True)                  # (1, 1)
    out_ref[...] = jnp.broadcast_to(partial.reshape(1, 1, 1), (1, 8, 128))


def label_smoothing_cross_entropy(x, target, smoothing=0.1, block_rows=None):
    """x: (N, C) logits (f32/bf16), target: (N,) int class indices -> scalar f32 loss."""
    N, C = x.shape
    assert smoothing < 1.0

    vmem_limit = _vmem_limit_bytes()

    # Row budget is set by the (TM, C) *f32* temporaries inside the kernel
    # (shifted / exp / weights / iota), which are input-dtype independent, so a
    # bf16 input does NOT get 2x rows.  ~3 MiB per f32 tile keeps the
    # double-buffered input plus ~5 full-tile temporaries comfortably inside
    # v7x's 32 MiB scoped VMEM while staying large enough to amortize the
    # ~0.35 us per-grid-step pipeline overhead on v5e/v6e.
    row_bytes_f32 = C * 4
    if block_rows is None:
        block_rows = min(1024, max(8, (3 * 1024 * 1024) // row_bytes_f32))
    block_rows = max(8, (block_rows // 8) * 8)

    # Hard VMEM fit: 2x double-buffered input tile + ~5 full-tile f32/i32 temps.
    itemsize = jnp.dtype(x.dtype).itemsize
    per_row_step_bytes = C * (2 * itemsize + 5 * 4)
    fit_rows = (vmem_limit // per_row_step_bytes // 8) * 8
    if fit_rows < 8:
        # TODO(synk): add a class-axis grid dimension with an online-softmax
        # carry (running max / denom / weighted sum) for vocab-scale C.
        raise ValueError(
            f"num_classes={C} too large for a single-tile class axis "
            f"(exceeds vmem_limit_bytes={vmem_limit} even at 8-row tiles)")
    block_rows = min(block_rows, fit_rows)

    # Pad the row axis to a multiple of 8 (block layout rule); padded rows are
    # masked inside the kernel. No-op (no HBM copy) when N is already aligned.
    n_pad = _round_up(N, 8)
    t2d = target.astype(jnp.int32).reshape(N, 1)
    if n_pad != N:
        x = jnp.pad(x, ((0, n_pad - N), (0, 0)))
        t2d = jnp.pad(t2d, ((0, n_pad - N), (0, 0)))

    # Keep >= ~4 grid steps when there are enough rows: lets the "parallel" row
    # axis shard across v7x's two TensorCores and gives the BlockSpec pipeline
    # something to overlap (neutral on single-TC v5e/v6e).
    four_step_rows = max(8, ((n_pad // 4) // 8) * 8)
    block_rows = min(block_rows, four_step_rows, n_pad)

    num_tiles = pl.cdiv(n_pad, block_rows)

    kernel = functools.partial(_ls_ce_kernel, smoothing=smoothing,
                               n_valid=N, block_rows=block_rows)

    partials = pl.pallas_call(
        kernel,
        out_shape=jax.ShapeDtypeStruct((num_tiles, 8, 128), jnp.float32),
        grid=(num_tiles,),
        in_specs=[
            pl.BlockSpec((block_rows, C), lambda i: (i, 0)),
            pl.BlockSpec((block_rows, 1), lambda i: (i, 0)),
        ],
        out_specs=pl.BlockSpec((1, 8, 128), lambda i: (i, 0, 0)),
        compiler_params=pltpu.CompilerParams(
            dimension_semantics=("parallel",),
            vmem_limit_bytes=vmem_limit,
        ),
    )(x, t2d)

    # Each tile's partial sum is replicated over its lane-dense (8, 128) block;
    # take one copy per tile and the batch mean over the true N rows.
    return jnp.sum(partials[:, 0, 0]) / jnp.float32(N)


def _reference(x, target, smoothing=0.1):
    confidence = 1.0 - smoothing
    logprobs = jax.nn.log_softmax(x.astype(jnp.float32), axis=-1)
    nll = -jnp.take_along_axis(logprobs, target[:, None], axis=-1)[:, 0]
    smooth = -jnp.mean(logprobs, axis=-1)
    return jnp.mean(confidence * nll + smoothing * smooth)


if __name__ == "__main__":
    key = jax.random.PRNGKey(0)
    kx, kt = jax.random.split(key)
    N, C = 16, 32                       # batch=16, num_classes=32
    x = jax.random.normal(kx, (N, C), dtype=jnp.float32)
    target = jax.random.randint(kt, (N,), 0, C, dtype=jnp.int32)

    loss = label_smoothing_cross_entropy(x, target, smoothing=0.1)
    loss = jax.block_until_ready(loss)

    ref = _reference(x, target, smoothing=0.1)
    assert jnp.allclose(loss, ref, atol=1e-5, rtol=1e-5), (loss, ref)
    print("KERNEL_OK")
</pallas_src>

<mosaic_0001>
module attributes {stable_mosaic.version = 11 : i64} {
  func.func @_ls_ce_kernel(%arg0: i32, %arg1: memref<8x32xf32, #tpu.memory_space<vmem>>, %arg2: memref<8x1xi32, #tpu.memory_space<vmem>>, %arg3: memref<1x8x128xf32, #tpu.memory_space<vmem>>) attributes {dimension_semantics = [#tpu.dimension_semantics<parallel>], iteration_bounds = array<i64: 2>, scalar_prefetch = 0 : i64, scratch_operands = 0 : i64, tpu.core_type = #tpu.core_type<tc>, window_params = [{transform_indices = @transform_0, window_bounds = array<i64: 8, 32>}, {transform_indices = @transform_1, window_bounds = array<i64: 8, 1>}, {transform_indices = @transform_2, window_bounds = array<i64: 1, 8, 128>}]} {
    %c0 = arith.constant 0 : index
    %c0_0 = arith.constant 0 : index
    %0 = vector.load %arg1[%c0, %c0_0] : memref<8x32xf32, #tpu.memory_space<vmem>>, vector<8x32xf32>
    %c0_1 = arith.constant 0 : index
    %c0_2 = arith.constant 0 : index
    %1 = vector.load %arg2[%c0_1, %c0_2] : memref<8x1xi32, #tpu.memory_space<vmem>>, vector<8x1xi32>
    %cst = arith.constant dense<0xFF800000> : vector<8xf32>
    %2 = vector.multi_reduction <maximumf>, %0, %cst [1] : vector<8x32xf32> to vector<8xf32>
    %3 = vector.shape_cast %2 : vector<8xf32> to vector<8x1xf32>
    %4 = vector.broadcast %3 : vector<8x1xf32> to vector<8x32xf32>
    %5 = arith.subf %0, %4 : vector<8x32xf32>
    %6 = math.exp %5 : vector<8x32xf32>
    %cst_3 = arith.constant dense<0.000000e+00> : vector<8xf32>
    %7 = vector.multi_reduction <add>, %6, %cst_3 [1] : vector<8x32xf32> to vector<8xf32>
    %8 = vector.shape_cast %7 : vector<8xf32> to vector<8x1xf32>
    %9 = math.log %8 : vector<8x1xf32>
    %10 = tpu.iota {dimensions = array<i32: 1>} : vector<8x32xi32>
    %11 = vector.broadcast %1 : vector<8x1xi32> to vector<8x32xi32>
    %12 = arith.cmpi eq, %10, %11 : vector<8x32xi32>
    %cst_4 = arith.constant 0.903124988 : f32
    %cst_5 = arith.constant 3.125000e-03 : f32
    %13 = vector.broadcast %cst_4 : f32 to vector<8x32xf32>
    %14 = vector.broadcast %cst_5 : f32 to vector<8x32xf32>
    %15 = arith.select %12, %13, %14 : vector<8x32xi1>, vector<8x32xf32>
    %16 = arith.mulf %15, %5 : vector<8x32xf32>
    %cst_6 = arith.constant dense<0.000000e+00> : vector<8xf32>
    %17 = vector.multi_reduction <add>, %16, %cst_6 [1] : vector<8x32xf32> to vector<8xf32>
    %18 = vector.shape_cast %17 : vector<8xf32> to vector<8x1xf32>
    %19 = arith.subf %9, %18 : vector<8x1xf32>
    %c8_i32 = arith.constant 8 : i32
    %20 = arith.muli %arg0, %c8_i32 : i32
    %21 = tpu.iota {dimensions = array<i32: 0>} : vector<8x1xi32>
    %22 = vector.broadcast %20 : i32 to vector<8x1xi32>
    %23 = arith.addi %22, %21 : vector<8x1xi32>
    %c16_i32 = arith.constant 16 : i32
    %24 = vector.broadcast %c16_i32 : i32 to vector<8x1xi32>
    %25 = arith.cmpi slt, %23, %24 : vector<8x1xi32>
    %cst_7 = arith.constant 0.000000e+00 : f32
    %26 = vector.broadcast %cst_7 : f32 to vector<8x1xf32>
    %27 = arith.select %25, %19, %26 : vector<8x1xi1>, vector<8x1xf32>
    %cst_8 = arith.constant dense<0.000000e+00> : vector<1xf32>
    %28 = vector.multi_reduction <add>, %27, %cst_8 [0] : vector<8x1xf32> to vector<1xf32>
    %29 = vector.shape_cast %28 : vector<1xf32> to vector<1x1xf32>
    %30 = vector.shape_cast %29 : vector<1x1xf32> to vector<1x1x1xf32>
    %31 = vector.shape_cast %30 : vector<1x1x1xf32> to vector<1x1x1xf32>
    %32 = vector.broadcast %31 : vector<1x1x1xf32> to vector<1x8x128xf32>
    %c0_9 = arith.constant 0 : index
    %c0_10 = arith.constant 0 : index
    %c0_11 = arith.constant 0 : index
    %33 = vector.load %arg3[%c0_9, %c0_10, %c0_11] : memref<1x8x128xf32, #tpu.memory_space<vmem>>, vector<1x8x128xf32>
    tpu.vector_store %arg3[%c0_9, %c0_10, %c0_11], %32 {strides = array<i32>} : memref<1x8x128xf32, #tpu.memory_space<vmem>>, vector<1x8x128xf32>,
    return
  }
  func.func @transform_0(%arg0: i32) -> (i32, i32) {
    %c0_i32 = arith.constant 0 : i32
    %c0_i32_0 = arith.constant 0 : i32
    return %arg0, %c0_i32 : i32, i32
  }
  func.func @transform_1(%arg0: i32) -> (i32, i32) {
    %c0_i32 = arith.constant 0 : i32
    %c0_i32_0 = arith.constant 0 : i32
    return %arg0, %c0_i32 : i32, i32
  }
  func.func @transform_2(%arg0: i32) -> (i32, i32, i32) {
    %c0_i32 = arith.constant 0 : i32
    %c0_i32_0 = arith.constant 0 : i32
    %c0_i32_1 = arith.constant 0 : i32
    return %arg0, %c0_i32, %c0_i32_0 : i32, i32, i32
  }
}

</mosaic_0001>

<llo_original>
// kernel: tpu_custom_call.1
$region0: #{tpu_custom_call.1}
  #allocation0 [shape = 'u32[]', space=smem, size = 0x4, offset = 0x4, fixed_abs, tag = 'smem constant byte address 0x4 - core index']
  #allocation1 [shape = 'u32[144,128]{1,0:T(1,128)}', space=vmem, size = 0x12000, scoped, tag = 'internal scratch']
  %s0 = inlined_call_operand.vmem [shape: f32[16,32], index: 0, kind: input, shape index: {}]
  %s1 = inlined_call_operand.vmem [shape: s32[16,1], index: 1, kind: input, shape index: {}]
  %s2 = inlined_call_operand.hbm [shape: f32[2,8,128], index: 2, kind: output, shape index: {}]
  %s3 = sld [smem:[#allocation0]]
  $region41: #{tpu_custom_call.1} parent=0
    _
  %s5 = ssub.s32 1, %s3
  %s6 = scalar_select 0, %s5, %s3
  $region1: #{tpu_custom_call.1} parent=0
    #allocation2 [shape = 'u8[8192]{0}', space=vmem, size = 0x2000, scoped, tag = 'output window, operand 0']
    #allocation3 [shape = 's32[2]{0}', space=sflag, size = 0x8, scoped, tag = 'scoped memory for tpu_custom_call.1']
    %7 = vsyncpa [#allocation3], 0
    %s8 = scalar_lea.sflag [#allocation3], 1
    %9 = vsyncpa %s8, 0
    loop: start=0, step=1, limit=4
    $region2: #{tpu_custom_call.1} parent=1 // loop_pre_header
      _
    $region3: #{tpu_custom_call.1} parent=1 // loop_header
      %s11 = sphi 0, %s15
      %p12 = scmp.ge.s32.totalorder %s11, 4
      %s21 = sphi 0, %s23
      %s24 = sphi 0, %s21
      %s25 = sphi 0, %s24
      %s41 = sphi 0, %s25
      %s47 = sphi 0, %s49
      %s50 = sphi 0, %s47
      %s51 = sphi 0, %s50
      %s67 = sphi 0, %s51
      %s73 = sphi 0, %s75
      %s76 = sphi 0, %s73
      %s77 = sphi 0, %s76
      %s93 = sphi 0, %s77
    $region4: #{tpu_custom_call.1} parent=1 // loop_header_branch
      %14 = sbr.rel (%p12) target = $region8
    $region5: #{tpu_custom_call.1} parent=1 // loop_body
      %s16 = ssub.s32 %s11, 1
      %s17 = ssub.s32 %s11, 2
      %s18 = sadd.s32 %s11, 1
      %s19 = ssub.s32 %s11, %s18
      %p20 = scmp.eq.s32.totalorder %s19, 0
      %s22 = sadd.s32 %s21, 1
      %s23 = scalar_select %p20, %s21, %s22
      %p26 = pneg %p20
      %p27 = scmp.eq.s32.totalorder %s11, 1
      %p28 = por %p26, %p27
      %p29 = scmp.ne.s32.totalorder %s21, %s24
      %p30 = scmp.eq.s32.totalorder %s11, 0
      %p31 = por %p29, %p30
      %p32 = scmp.ne.s32.totalorder %s21, %s24
      %p33 = scmp.eq.s32.totalorder %s16, 1
      %p34 = por %p32, %p33
      %p35 = scmp.ne.s32.totalorder %s24, %s25
      %p36 = scmp.eq.s32.totalorder %s16, 0
      %p37 = por %p35, %p36
      %p38 = scmp.ne.s32.totalorder %s24, %s25
      %p39 = scmp.eq.s32.totalorder %s17, 1
      %p40 = por %p38, %p39
      %p42 = scmp.ne.s32.totalorder %s25, %s41
      %p43 = scmp.eq.s32.totalorder %s17, 0
      %p44 = por %p42, %p43
      %s45 = ssub.s32 %s11, %s18
      %p46 = scmp.eq.s32.totalorder %s45, 0
      %s48 = sadd.s32 %s47, 1
      %s49 = scalar_select %p46, %s47, %s48
      %p52 = pneg %p46
      %p53 = scmp.eq.s32.totalorder %s11, 1
      %p54 = por %p52, %p53
      %p55 = scmp.ne.s32.totalorder %s47, %s50
      %p56 = scmp.eq.s32.totalorder %s11, 0
      %p57 = por %p55, %p56
      %p58 = scmp.ne.s32.totalorder %s47, %s50
      %p59 = scmp.eq.s32.totalorder %s16, 1
      %p60 = por %p58, %p59
      %p61 = scmp.ne.s32.totalorder %s50, %s51
      %p62 = scmp.eq.s32.totalorder %s16, 0
      %p63 = por %p61, %p62
      %p64 = scmp.ne.s32.totalorder %s50, %s51
      %p65 = scmp.eq.s32.totalorder %s17, 1
      %p66 = por %p64, %p65
      %p68 = scmp.ne.s32.totalorder %s51, %s67
      %p69 = scmp.eq.s32.totalorder %s17, 0
      %p70 = por %p68, %p69
      %s71 = ssub.s32 %s11, %s18
      %p72 = scmp.eq.s32.totalorder %s71, 0
      %s74 = sadd.s32 %s73, 1
      %s75 = scalar_select %p72, %s73, %s74
      %p78 = pneg %p72
      %p79 = scmp.eq.s32.totalorder %s11, 1
      %p80 = por %p78, %p79
      %p81 = scmp.ne.s32.totalorder %s73, %s76
      %p82 = scmp.eq.s32.totalorder %s11, 0
      %p83 = por %p81, %p82
      %p84 = scmp.ne.s32.totalorder %s73, %s76
      %p85 = scmp.eq.s32.totalorder %s16, 1
      %p86 = por %p84, %p85
      %p87 = scmp.ne.s32.totalorder %s76, %s77
      %p88 = scmp.eq.s32.totalorder %s16, 0
      %p89 = por %p87, %p88
      %p90 = scmp.ne.s32.totalorder %s76, %s77
      %p91 = scmp.eq.s32.totalorder %s17, 1
      %p92 = por %p90, %p91
      %p94 = scmp.ne.s32.totalorder %s77, %s93
      %p95 = scmp.eq.s32.totalorder %s17, 0
      %p96 = por %p94, %p95
      %p97 = scmp.le.s32.totalorder 1, %s11
      %p98 = scmp.lt.s32.totalorder %s11, 3
      %p99 = pnand %p97, %p98
      %p100 = pneg %p99
      // Predicated region
      $region9: #{tpu_custom_call.1} parent=5 // pred_check
        _
      $region10: #{tpu_custom_call.1} parent=5 // pred_check_branch
        %102 = sbr.rel (%p99) target = $region12
      $region11: #{tpu_custom_call.1} parent=5 // pred_region
        %s103 = ssub.s32 %s11, 1
      $region12: #{tpu_custom_call.1} parent=5 // pred_fallthru
        _
      %p104 = scmp.lt.s32.totalorder %s11, 2
      // Predicated region
      $region13: #{tpu_custom_call.1} parent=5 // pred_check
        %p105 = pneg %p104
      $region14: #{tpu_custom_call.1} parent=5 // pred_check_branch
        %107 = sbr.rel (%p105) target = $region16
      $region15: #{tpu_custom_call.1} parent=5 // pred_region
        // Predicated region
        $region17: #{tpu_custom_call.1} parent=15 // pred_check
          %p108 = pneg %p31
        $region18: #{tpu_custom_call.1} parent=15 // pred_check_branch
          %110 = sbr.rel (%p108) target = $region20
        $region19: #{tpu_custom_call.1} parent=15 // pred_region
          %p111 = scmp.lt.s32.totalorder %s11, 1
          %s112 = scalar_select %p111, %s11, 1
          %s113 = smul.addr %s112, 8
          %s114 = scalar_lea.vmem %s0, %s113
        $region20: #{tpu_custom_call.1} parent=15 // pred_fallthru
          _
        // Predicated region
        $region21: #{tpu_custom_call.1} parent=15 // pred_check
          %p115 = pneg %p57
        $region22: #{tpu_custom_call.1} parent=15 // pred_check_branch
          %117 = sbr.rel (%p115) target = $region24
        $region23: #{tpu_custom_call.1} parent=15 // pred_region
          %p118 = scmp.lt.s32.totalorder %s11, 1
          %s119 = scalar_select %p118, %s11, 1
          %s120 = smul.addr %s119, 8
          %s121 = scalar_lea.vmem %s1, %s120
        $region24: #{tpu_custom_call.1} parent=15 // pred_fallthru
          _
      $region16: #{tpu_custom_call.1} parent=5 // pred_fallthru
        _
      %p122 = scmp.le.s32.totalorder 1, %s11
      %p123 = scmp.lt.s32.totalorder %s11, 3
      %p124 = pnand %p122, %p123
      %p125 = pneg %p124
      // Predicated region
      $region25: #{tpu_custom_call.1} parent=5 // pred_check
        _
      $region26: #{tpu_custom_call.1} parent=5 // pred_check_branch
        %127 = sbr.rel (%p124) target = $region28
      $region27: #{tpu_custom_call.1} parent=5 // pred_region
        %s128 = ssub.s32 %s11, 1
        %p129 = scmp.lt.s32.totalorder %s16, 1
        %s130 = scalar_select %p129, %s16, 1
        %s131 = smul.addr %s130, 8
        %s132 = scalar_lea.vmem %s0, %s131
        %p133 = pneg %p37
        %p134 = pneg %p34
        %p135 = scmp.lt.s32.totalorder %s16, 1
        %s136 = scalar_select %p135, %s16, 1
        %s137 = smul.addr %s136, 8
        %s138 = scalar_lea.vmem %s1, %s137
        %p139 = pneg %p63
        %p140 = pneg %p60
        %p141 = pneg %p89
        %p142 = pneg %p86
        %s143 = sand.u32 %s76, 1
        %s144 = scalar_lea.sflag [#allocation3], %s143
        %s145 = sand.u32 %s76, 1
        %s146 = smul.addr %s145, 8
        %s147 = scalar_lea.vmem [#allocation2], %s146
        %p148 = scmp.lt.s32.totalorder %s16, 1
        %s149 = scalar_select %p148, %s16, 1
        %s150 = smul.addr %s149, 8
        %s151 = scalar_lea.vmem %s0, %s150
        %p152 = scmp.lt.s32.totalorder %s16, 1
        %s153 = scalar_select %p152, %s16, 1
        %s154 = smul.addr %s153, 8
        %s155 = scalar_lea.vmem %s1, %s154
        %v156 = vld [vmem:[%s151] sm:$0xff]
        %v157 = vld [vmem:[%s155] sm:$0xff]
        %vm158 = vcmask 261120
        %v159 = vsel %vm158, %v156, -inf
        %160 = vmax.xlane.f32.xlu0 %v159
        %v161 = vpop.xlane.xlu0 %160
        %v162 = vsub.f32 %v156, %v161
        %v163 = vmul.f32 %v162, 1.442695
        %v164 = vpow.pop %v163
        %v165 = vsel %vm158, %v164, 0.0
        %166 = vadd.xlane.f32.xlu0 %v165
        %v167 = vpop.xlane.xlu0 %166
        %v168 = vlog2.pop %v167
        %v169 = vmul.f32 %v168, 0.6931472
        %v170 = vlaneseq
        %v171 = vand.u32 %v170, 127
        %172 = vset.pattern.permute.xlu0 0
        %173 = vperm.xlu0 %172, %v157
        %v174 = vpop.permute.xlu0 %173
        %vm175 = vcmp.eq.s32.totalorder %v171, %v174
        %v176 = vsel %vm175, 0.903125, 0.003125
        %v177 = vmul.f32 %v176, %v162
        %v178 = vsel %vm158, %v177, 0.0
        %179 = vadd.xlane.f32.xlu0 %v178
        %v180 = vpop.xlane.xlu0 %179
        %v181 = vsub.f32 %v169, %v180
        %s182 = smul.u32 %s16, 8
        %v183 = vlaneseq
        %v184 = vshrl.u32 %v183, 7
        %v185 = vstv %s182
        %v186 = vadd.s32 %v185, %v184
        %vm187 = vcmp.lt.s32.totalorder %v186, 16
        %v188 = vsel %vm187, %v181, 0.0
        %v189 = vrot.slane %v188, 4
        %v190 = vadd.f32 %v188, %v189
        %v191 = vrot.slane %v190, 2
        %v192 = vadd.f32 %v190, %v191
        %v193 = vrot.slane %v192, 1
        %v194 = vadd.f32 %v192, %v193
        %195 = vst [vmem:[%s147] sm:$0xff] %v194
        %s196 = sand.u32 %s76, 1
        %s197 = scalar_lea.sflag [#allocation3], %s196
        %s198 = sand.u32 %s76, 1
        %s199 = smul.addr %s198, 8
        %s200 = scalar_lea.vmem [#allocation2], %s199
        // Predicated region
        $region29: #{tpu_custom_call.1} parent=27 // pred_check
          %p201 = pneg %p86
        $region30: #{tpu_custom_call.1} parent=27 // pred_check_branch
          %203 = sbr.rel (%p201) target = $region32
        $region31: #{tpu_custom_call.1} parent=27 // pred_region
          %s205 = ssub.s32 128, 128
          %206 = vsyncadd %s197, %s205
          %s207 = smul.addr %s16, 128
          %s208 = scalar_lea.hbm %s2, %s207
          %s210 = sshll.u32 %s200, 4
          %s211 = int_to_ptr.vmem [resolvable:$true] %s210
          %213 = dma.vmem_to_hbm [thread:$0]  %s211, 128, %s208, %s197
        $region32: #{tpu_custom_call.1} parent=27 // pred_fallthru
          _
      $region28: #{tpu_custom_call.1} parent=5 // pred_fallthru
        _
      %p214 = scmp.le.s32.totalorder 2, %s11
      // Predicated region
      $region33: #{tpu_custom_call.1} parent=5 // pred_check
        %p215 = pneg %p214
      $region34: #{tpu_custom_call.1} parent=5 // pred_check_branch
        %217 = sbr.rel (%p215) target = $region36
      $region35: #{tpu_custom_call.1} parent=5 // pred_region
        %s218 = ssub.s32 %s11, 2
        // Predicated region
        $region37: #{tpu_custom_call.1} parent=35 // pred_check
          %p219 = pneg %p92
        $region38: #{tpu_custom_call.1} parent=35 // pred_check_branch
          %221 = sbr.rel (%p219) target = $region40
        $region39: #{tpu_custom_call.1} parent=35 // pred_region
          %s222 = sand.u32 %s77, 1
          %s223 = scalar_lea.sflag [#allocation3], %s222
          %s224 = sand.u32 %s77, 1
          %s225 = smul.addr %s224, 8
          %s226 = scalar_lea.vmem [#allocation2], %s225
          %227 = dma.done %s223, 128
        $region40: #{tpu_custom_call.1} parent=35 // pred_fallthru
          _
      $region36: #{tpu_custom_call.1} parent=5 // pred_fallthru
        _
    $region6: #{tpu_custom_call.1} parent=1 // loop_footer
      %s15 = sadd.s32 1, %s11
    $region7: #{tpu_custom_call.1} parent=1 // loop_footer_branch
      %10 = sbr.rel target = $region3
    $region8: #{tpu_custom_call.1} parent=1 // loop_exit
      _
    %228 = vsyncpa [#allocation3], 1
    %s229 = scalar_lea.sflag [#allocation3], 1
    %230 = vsyncpa %s229, 1

</llo_original>
